<compile_context>
chip_gen: v5e
topology: v5e:2x2
jax: 0.10.0
libtpu: 0.0.40
codegen_flags: <defaults>
</compile_context>

<pallas_src>
import numpy as np
import jax
import jax.numpy as jnp
from jax.experimental import pallas as pl
from jax.experimental.pallas import tpu as pltpu

HIDDEN = 3

MAX_TILE_BYTES = 4 * 1024 * 1024      # target per-tile footprint (4 MiB)
MIN_TILE_BYTES = 512 * 1024           # don't shrink tiles below this when splitting
MIN_GRID_STEPS = 8                    # keep v7x's two TensorCores + pipeline fed
VMEM_LIMIT_BYTES = 32 * 1024 * 1024   # 2x(in+out) double buffers @ 4 MiB = 16 MiB (+headroom)


def _round_up(x, m):
    return -(-x // m) * m


def _make_kernel(signs, add_b2):
    """Fused elementwise kernel; hidden-unit sign pattern baked in at trace time.

    Per element: out = b2 + sum_k w2[k]*relu(w1[k]*x + b1[k]).
    With a_k = w2[k]*w1[k], c_k = w2[k]*b1[k] and ReLU positive homogeneity:
        w2[k]*relu(w1[k]*x + b1[k]) = max(a_k*x + c_k, 0)  if w2[k] > 0
                                    = min(a_k*x + c_k, 0)  if w2[k] < 0
    i.e. mul + add + (max|min) per unit: ~12 VALU ops/element total.
    """
    def kernel(a_ref, c_ref, b2_ref, x_ref, o_ref):
        x = x_ref[...]
        acc = None
        for k, s in enumerate(signs):
            if s == 0:
                continue
            t = x * a_ref[k] + c_ref[k]
            t = jnp.maximum(t, 0.0) if s > 0 else jnp.minimum(t, 0.0)
            acc = t if acc is None else acc + t
        if acc is None:
            acc = jnp.zeros_like(x)
        if add_b2:
            acc = acc + b2_ref[0]
        o_ref[...] = acc
    return kernel


def _choose_layout(n):
    """Pick a lane-dense 2-D working layout (rows, C) for n flat elements.

    Prefer a column width that divides n exactly with rows a multiple of 8
    (no pad / output-slice HBM copies).  Fallback: C=128 with rows rounded up
    to the f32 sublane minimum of 8 (minimal pad).
    """
    for c in (512, 256, 128):
        if n % c == 0:
            rows = n // c
            if rows % 8 == 0 or rows < 8:
                return c, rows, 0
    c = 128
    rows = _round_up(-(-n // c), 8)
    return c, rows, rows * c - n


def _choose_tile_rows(rows, c):
    """Up to 4 MiB tiles; split into >= ~8 grid steps on large inputs while
    keeping per-step tiles >= ~512 KiB so the ~0.35 us step overhead stays small."""
    if rows < 8:
        return rows                      # tiny input: single full-array block
    bytes_per_row = c * 4
    max_tile_rows = max(8, (MAX_TILE_BYTES // bytes_per_row) // 8 * 8)
    tile_rows = min(max_tile_rows, rows)
    if -(-rows // tile_rows) < MIN_GRID_STEPS:
        min_split_rows = max(8, (MIN_TILE_BYTES // bytes_per_row) // 8 * 8)
        split_rows = max(min_split_rows, _round_up(-(-rows // MIN_GRID_STEPS), 8))
        tile_rows = min(tile_rows, split_rows)
    return tile_rows


def activation_net(x, w1, b1, w2, b2):
    """x: (B, S) float32 -> (B, S) float32 (matches ActivationNet.forward)."""
    orig_shape = x.shape
    if x.dtype != jnp.float32:
        x = x.astype(jnp.float32)        # module is f32; keeps 8-row sublane tiles valid
    n = x.size

    # Host-side constant folding (module parameters are fixed constants).
    w1h = np.asarray(jax.device_get(w1), dtype=np.float32).reshape(HIDDEN)
    b1h = np.asarray(jax.device_get(b1), dtype=np.float32).reshape(HIDDEN)
    w2h = np.asarray(jax.device_get(w2), dtype=np.float32).reshape(HIDDEN)
    b2h = np.asarray(jax.device_get(b2), dtype=np.float32).reshape(1)
    a = jnp.asarray(w2h * w1h)           # (3,) folded weights
    c = jnp.asarray(w2h * b1h)           # (3,) folded biases
    b2v = jnp.asarray(b2h)               # (1,)
    signs = tuple(int(np.sign(v)) for v in w2h)
    add_b2 = bool(b2h[0] != 0.0)

    C, rows, pad = _choose_layout(n)
    flat = x.reshape(-1)
    if pad:
        flat = jnp.pad(flat, (0, pad))
    x2d = flat.reshape(rows, C)

    tile_rows = _choose_tile_rows(rows, C)
    grid = (pl.cdiv(rows, tile_rows),)

    out2d = pl.pallas_call(
        _make_kernel(signs, add_b2),
        out_shape=jax.ShapeDtypeStruct((rows, C), jnp.float32),
        grid=grid,
        in_specs=[
            pl.BlockSpec(memory_space=pltpu.SMEM),            # a  (3,)
            pl.BlockSpec(memory_space=pltpu.SMEM),            # c  (3,)
            pl.BlockSpec(memory_space=pltpu.SMEM),            # b2 (1,)
            pl.BlockSpec((tile_rows, C), lambda i: (i, 0)),   # x tile
        ],
        out_specs=pl.BlockSpec((tile_rows, C), lambda i: (i, 0)),
        compiler_params=pltpu.CompilerParams(
            dimension_semantics=("parallel",),
            vmem_limit_bytes=VMEM_LIMIT_BYTES),
        cost_estimate=pl.CostEstimate(
            flops=4 * HIDDEN * rows * C,
            transcendentals=0,
            bytes_accessed=2 * rows * C * 4 + (2 * n * 4 if pad else 0)),
    )(a, c, b2v, x2d)

    out_flat = out2d.reshape(-1)
    if pad:
        out_flat = out_flat[:n]
    return out_flat.reshape(orig_shape)


def reference(x, w1, b1, w2, b2):
    """Pure-JAX reference reproducing the PyTorch forward exactly."""
    B, S = x.shape
    xf = x.reshape(-1, 1)                                   # (B*S, 1)
    h = jnp.maximum(xf @ w1.reshape(1, HIDDEN) + b1, 0.0)   # Linear(1,3) + ReLU
    out = h @ w2.reshape(HIDDEN, 1) + b2                    # Linear(3,1)
    return out.reshape(B, S)


if __name__ == "__main__":
    # Deterministic parameters, exactly as hard-coded in the PyTorch __init__.
    w1 = jnp.array([1.0, 1.0, 1.0], dtype=jnp.float32)     # input_layer.weight.view(-1)
    b1 = jnp.array([-0.2, -0.1, 0.0], dtype=jnp.float32)   # input_layer.bias
    w2 = jnp.array([1.0, 1.0, -1.0], dtype=jnp.float32)    # output_layer.weight.view(-1)
    b2 = jnp.array([0.0], dtype=jnp.float32)                # output_layer.bias

    key = jax.random.PRNGKey(0)

    # Small deterministic input matching the module's 2-D usage: batch=2, seq=8.
    x_small = jax.random.normal(key, (2, 8), dtype=jnp.float32)
    out_small = jax.block_until_ready(activation_net(x_small, w1, b1, w2, b2))
    ref_small = reference(x_small, w1, b1, w2, b2)
    assert out_small.shape == ref_small.shape == x_small.shape
    assert jnp.allclose(out_small, ref_small, atol=1e-6, rtol=1e-6), \
        "mismatch vs reference (small)"

    # A medium shape: exercises the no-pad fast path and a multi-step grid.
    x_med = jax.random.normal(jax.random.PRNGKey(0), (640, 1024), dtype=jnp.float32)
    out_med = jax.block_until_ready(activation_net(x_med, w1, b1, w2, b2))
    ref_med = reference(x_med, w1, b1, w2, b2)
    assert out_med.shape == ref_med.shape == x_med.shape
    assert jnp.allclose(out_med, ref_med, atol=1e-6, rtol=1e-6), \
        "mismatch vs reference (tiled)"

    # An awkward shape: exercises the minimal-pad fallback path.
    x_odd = jax.random.normal(jax.random.PRNGKey(0), (5, 100), dtype=jnp.float32)
    out_odd = jax.block_until_ready(activation_net(x_odd, w1, b1, w2, b2))
    ref_odd = reference(x_odd, w1, b1, w2, b2)
    assert out_odd.shape == ref_odd.shape == x_odd.shape
    assert jnp.allclose(out_odd, ref_odd, atol=1e-6, rtol=1e-6), \
        "mismatch vs reference (padded fallback)"

    print("KERNEL_OK")
</pallas_src>

<mosaic_0001>
module attributes {stable_mosaic.version = 11 : i64} {
  func.func @kernel(%arg0: i32, %arg1: memref<3xf32, #tpu.memory_space<smem>>, %arg2: memref<3xf32, #tpu.memory_space<smem>>, %arg3: memref<1xf32, #tpu.memory_space<smem>>, %arg4: memref<8x128xf32, #tpu.memory_space<vmem>>, %arg5: memref<8x128xf32, #tpu.memory_space<vmem>>) attributes {dimension_semantics = [#tpu.dimension_semantics<parallel>], iteration_bounds = array<i64: 1>, scalar_prefetch = 0 : i64, scratch_operands = 0 : i64, tpu.core_type = #tpu.core_type<tc>, window_params = [{transform_indices = @transform_0, window_bounds = array<i64: 3>}, {transform_indices = @transform_1, window_bounds = array<i64: 3>}, {transform_indices = @transform_2, window_bounds = array<i64: 1>}, {transform_indices = @transform_3, window_bounds = array<i64: 8, 128>}, {transform_indices = @transform_4, window_bounds = array<i64: 8, 128>}]} {
    %c0 = arith.constant 0 : index
    %c0_0 = arith.constant 0 : index
    %0 = vector.load %arg4[%c0, %c0_0] : memref<8x128xf32, #tpu.memory_space<vmem>>, vector<8x128xf32>
    %c0_1 = arith.constant 0 : index
    %1 = memref.load %arg1[%c0_1] : memref<3xf32, #tpu.memory_space<smem>>
    %2 = vector.broadcast %1 : f32 to vector<8x128xf32>
    %3 = arith.mulf %0, %2 : vector<8x128xf32>
    %c0_2 = arith.constant 0 : index
    %4 = memref.load %arg2[%c0_2] : memref<3xf32, #tpu.memory_space<smem>>
    %5 = vector.broadcast %4 : f32 to vector<8x128xf32>
    %6 = arith.addf %3, %5 : vector<8x128xf32>
    %cst = arith.constant 0.000000e+00 : f32
    %7 = vector.broadcast %cst : f32 to vector<8x128xf32>
    %8 = arith.maximumf %6, %7 : vector<8x128xf32>
    %c1 = arith.constant 1 : index
    %9 = memref.load %arg1[%c1] : memref<3xf32, #tpu.memory_space<smem>>
    %10 = vector.broadcast %9 : f32 to vector<8x128xf32>
    %11 = arith.mulf %0, %10 : vector<8x128xf32>
    %c1_3 = arith.constant 1 : index
    %12 = memref.load %arg2[%c1_3] : memref<3xf32, #tpu.memory_space<smem>>
    %13 = vector.broadcast %12 : f32 to vector<8x128xf32>
    %14 = arith.addf %11, %13 : vector<8x128xf32>
    %cst_4 = arith.constant 0.000000e+00 : f32
    %15 = vector.broadcast %cst_4 : f32 to vector<8x128xf32>
    %16 = arith.maximumf %14, %15 : vector<8x128xf32>
    %17 = arith.addf %8, %16 : vector<8x128xf32>
    %c2 = arith.constant 2 : index
    %18 = memref.load %arg1[%c2] : memref<3xf32, #tpu.memory_space<smem>>
    %19 = vector.broadcast %18 : f32 to vector<8x128xf32>
    %20 = arith.mulf %0, %19 : vector<8x128xf32>
    %c2_5 = arith.constant 2 : index
    %21 = memref.load %arg2[%c2_5] : memref<3xf32, #tpu.memory_space<smem>>
    %22 = vector.broadcast %21 : f32 to vector<8x128xf32>
    %23 = arith.addf %20, %22 : vector<8x128xf32>
    %cst_6 = arith.constant 0.000000e+00 : f32
    %24 = vector.broadcast %cst_6 : f32 to vector<8x128xf32>
    %25 = arith.minimumf %23, %24 : vector<8x128xf32>
    %26 = arith.addf %17, %25 : vector<8x128xf32>
    %c0_7 = arith.constant 0 : index
    %c0_8 = arith.constant 0 : index
    %27 = vector.load %arg5[%c0_7, %c0_8] : memref<8x128xf32, #tpu.memory_space<vmem>>, vector<8x128xf32>
    tpu.vector_store %arg5[%c0_7, %c0_8], %26 {strides = array<i32>} : memref<8x128xf32, #tpu.memory_space<vmem>>, vector<8x128xf32>,
    return
  }
  func.func @transform_0(%arg0: i32) -> i32 {
    %c0_i32 = arith.constant 0 : i32
    %c0_i32_0 = arith.constant 0 : i32
    return %c0_i32 : i32
  }
  func.func @transform_1(%arg0: i32) -> i32 {
    %c0_i32 = arith.constant 0 : i32
    %c0_i32_0 = arith.constant 0 : i32
    return %c0_i32 : i32
  }
  func.func @transform_2(%arg0: i32) -> i32 {
    %c0_i32 = arith.constant 0 : i32
    %c0_i32_0 = arith.constant 0 : i32
    return %c0_i32 : i32
  }
  func.func @transform_3(%arg0: i32) -> (i32, i32) {
    %c0_i32 = arith.constant 0 : i32
    %c0_i32_0 = arith.constant 0 : i32
    return %arg0, %c0_i32 : i32, i32
  }
  func.func @transform_4(%arg0: i32) -> (i32, i32) {
    %c0_i32 = arith.constant 0 : i32
    %c0_i32_0 = arith.constant 0 : i32
    return %arg0, %c0_i32 : i32, i32
  }
}

</mosaic_0001>

<llo_original>
// kernel: tpu_custom_call.1
$region0: #{tpu_custom_call.1}
  #allocation0 [shape = 'u32[]', space=smem, size = 0x4, offset = 0x4, fixed_abs, tag = 'smem constant byte address 0x4 - core index']
  #allocation1 [shape = 'u32[72,128]{1,0:T(1,128)}', space=vmem, size = 0x9000, scoped, tag = 'internal scratch']
  #allocation2 [shape = 'f32[1]{0:T(128)S(6)}', space=smem, size = 0x200, scoped, tag = 'scoped memory for tpu_custom_call.1']
  %s0 = inlined_call_operand.vmem [shape: f32[3], index: 0, kind: input, shape index: {}]
  %s1 = inlined_call_operand.vmem [shape: f32[3], index: 1, kind: input, shape index: {}]
  %s2 = inlined_call_operand.<no memory space> [shape: f32[1], index: 2, kind: input, shape index: {}]
  %s3 = inlined_call_operand.hbm [shape: f32[8,128], index: 3, kind: input, shape index: {}]
  %s4 = inlined_call_operand.hbm [shape: f32[8,128], index: 4, kind: output, shape index: {}]
  %s5 = sld [smem:[#allocation0]]
  $region38: #{tpu_custom_call.1} parent=0
    _
  %s7 = ssub.s32 1, %s5
  %s8 = scalar_select 0, %s7, %s5
  %9 = sst [smem:[#allocation2]] %s2
  $region1: #{tpu_custom_call.1} parent=0
    #allocation3 [shape = 'u8[512]{0}', space=smem, size = 0x200, scoped, tag = 'input window, operand 0, single buffered']
    #allocation4 [shape = 's32[1]{0}', space=sflag, size = 0x4, scoped, tag = 'scoped memory for tpu_custom_call.1']
    #allocation5 [shape = 's32[1]{0}', space=sflag, size = 0x4, scoped, tag = 'scoped memory for tpu_custom_call.1']
    #allocation6 [shape = 's32[1]{0}', space=sflag, size = 0x4, scoped, tag = 'scoped memory for tpu_custom_call.1']
    #allocation7 [shape = 'u8[512]{0}', space=smem, size = 0x200, scoped, tag = 'input window, operand 1, single buffered']
    #allocation8 [shape = 's32[1]{0}', space=sflag, size = 0x4, scoped, tag = 'scoped memory for tpu_custom_call.1']
    #allocation9 [shape = 'u8[4096]{0}', space=vmem, size = 0x1000, scoped, tag = 'input window, operand 3, single buffered']
    #allocation10 [shape = 'u8[4096]{0}', space=vmem, size = 0x1000, scoped, tag = 'output window, operand 0, single buffered']
    %10 = vsyncpa [#allocation6], 0
    %11 = vsyncpa [#allocation8], 0
    %12 = vsyncpa [#allocation4], 0
    %13 = vsyncpa [#allocation5], 0
    // Predicated region
    $region2: #{tpu_custom_call.1} parent=1 // pred_check
      _
    $region3: #{tpu_custom_call.1} parent=1 // pred_check_branch
      %15 = sbr.rel (0) target = $region5
    $region4: #{tpu_custom_call.1} parent=1 // pred_region
      %17 = vsyncadd [#allocation6], 0
      %s19 = sshll.u32 %s0, 4
      %s20 = int_to_ptr.vmem [resolvable:$true] %s19
      %22 = dma.vmem_to_smem %s20, 16, [#allocation3], [#allocation6]
    $region5: #{tpu_custom_call.1} parent=1 // pred_fallthru
      _
    // Predicated region
    $region6: #{tpu_custom_call.1} parent=1 // pred_check
      _
    $region7: #{tpu_custom_call.1} parent=1 // pred_check_branch
      %24 = sbr.rel (0) target = $region9
    $region8: #{tpu_custom_call.1} parent=1 // pred_region
      %26 = vsyncadd [#allocation8], 0
      %s28 = sshll.u32 %s1, 4
      %s29 = int_to_ptr.vmem [resolvable:$true] %s28
      %31 = dma.vmem_to_smem %s29, 16, [#allocation7], [#allocation8]
    $region9: #{tpu_custom_call.1} parent=1 // pred_fallthru
      _
    // Predicated region
    $region10: #{tpu_custom_call.1} parent=1 // pred_check
      _
    $region11: #{tpu_custom_call.1} parent=1 // pred_check_branch
      %33 = sbr.rel (0) target = $region13
    $region12: #{tpu_custom_call.1} parent=1 // pred_region
      _
    $region13: #{tpu_custom_call.1} parent=1 // pred_fallthru
      _
    // Predicated region
    $region14: #{tpu_custom_call.1} parent=1 // pred_check
      _
    $region15: #{tpu_custom_call.1} parent=1 // pred_check_branch
      %35 = sbr.rel (0) target = $region17
    $region16: #{tpu_custom_call.1} parent=1 // pred_region
      %37 = vsyncadd [#allocation4], 0
      %s39 = sshll.u32 %s3, 4
      %s40 = int_to_ptr.hbm [resolvable:$true] %s39
      %s41 = sshll.u32 [#allocation9], 4
      %s42 = int_to_ptr.vmem [resolvable:$true] %s41
      %44 = dma.hbm_to_vmem [thread:$0]  %s40, 128, %s42, [#allocation4]
    $region17: #{tpu_custom_call.1} parent=1 // pred_fallthru
      _
    // Predicated region
    $region18: #{tpu_custom_call.1} parent=1 // pred_check
      _
    $region19: #{tpu_custom_call.1} parent=1 // pred_check_branch
      %46 = sbr.rel (0) target = $region21
    $region20: #{tpu_custom_call.1} parent=1 // pred_region
      %48 = dma.done [#allocation6], 16
    $region21: #{tpu_custom_call.1} parent=1 // pred_fallthru
      _
    // Predicated region
    $region22: #{tpu_custom_call.1} parent=1 // pred_check
      _
    $region23: #{tpu_custom_call.1} parent=1 // pred_check_branch
      %50 = sbr.rel (0) target = $region25
    $region24: #{tpu_custom_call.1} parent=1 // pred_region
      %52 = dma.done [#allocation8], 16
    $region25: #{tpu_custom_call.1} parent=1 // pred_fallthru
      _
    // Predicated region
    $region26: #{tpu_custom_call.1} parent=1 // pred_check
      _
    $region27: #{tpu_custom_call.1} parent=1 // pred_check_branch
      %54 = sbr.rel (0) target = $region29
    $region28: #{tpu_custom_call.1} parent=1 // pred_region
      %56 = dma.done [#allocation4], 128
    $region29: #{tpu_custom_call.1} parent=1 // pred_fallthru
      _
    %57 = sfence
    %v58 = vld [vmem:[#allocation9] sm:$0xff]
    %s59 = sld [smem:[#allocation3]]
    %v60 = vstv %s59
    %v61 = vmul.f32 %v58, %v60
    %s62 = sld [smem:[#allocation7]]
    %v63 = vstv %s62
    %v64 = vadd.f32 %v61, %v63
    %v65 = vmax.f32 %v64, 0.0
    %s66 = sld [smem:[#allocation3 + $0x1]]
    %v67 = vstv %s66
    %v68 = vmul.f32 %v58, %v67
    %s69 = sld [smem:[#allocation7 + $0x1]]
    %v70 = vstv %s69
    %v71 = vadd.f32 %v68, %v70
    %v72 = vmax.f32 %v71, 0.0
    %v73 = vadd.f32 %v65, %v72
    %s74 = sld [smem:[#allocation3 + $0x2]]
    %v75 = vstv %s74
    %v76 = vmul.f32 %v58, %v75
    %s77 = sld [smem:[#allocation7 + $0x2]]
    %v78 = vstv %s77
    %v79 = vadd.f32 %v76, %v78
    %v80 = vmin.f32 %v79, 0.0
    %v81 = vadd.f32 %v73, %v80
    %82 = vst [vmem:[#allocation10] sm:$0xff] %v81
    // Predicated region
    $region30: #{tpu_custom_call.1} parent=1 // pred_check
      _
    $region31: #{tpu_custom_call.1} parent=1 // pred_check_branch
      %84 = sbr.rel (0) target = $region33
    $region32: #{tpu_custom_call.1} parent=1 // pred_region
      %86 = vsyncadd [#allocation5], 0
      %s88 = sshll.u32 [#allocation10], 4
      %s89 = int_to_ptr.vmem [resolvable:$true] %s88
      %s90 = sshll.u32 %s4, 4
      %s91 = int_to_ptr.hbm [resolvable:$true] %s90
      %93 = dma.vmem_to_hbm [thread:$0]  %s89, 128, %s91, [#allocation5]
    $region33: #{tpu_custom_call.1} parent=1 // pred_fallthru
      _
    // Predicated region
    $region34: #{tpu_custom_call.1} parent=1 // pred_check
      _
    $region35: #{tpu_custom_call.1} parent=1 // pred_check_branch
      %95 = sbr.rel (0) target = $region37
    $region36: #{tpu_custom_call.1} parent=1 // pred_region
      %97 = dma.done [#allocation5], 128
    $region37: #{tpu_custom_call.1} parent=1 // pred_fallthru
      _
    %98 = vsyncpa [#allocation4], 1
    %99 = vsyncpa [#allocation5], 1
    %100 = vsyncpa [#allocation6], 1
    %101 = vsyncpa [#allocation8], 1

</llo_original>
